<compile_context>
chip_gen: v5e
topology: v5e:2x2
jax: 0.10.0
libtpu: 0.0.40
codegen_flags: <defaults>
</compile_context>

<pallas_src>
import functools
import math

import jax
import jax.numpy as jnp
from jax.experimental import pallas as pl
from jax.experimental.pallas import tpu as pltpu

MIN_NORM = 1e-15
EPS_F32 = 1e-7
MAX_NORM = 1e6
C_CURV = 1.0  # hyperboloid curvature parameter c (K = 1/c)

# Per-kernel scoped VMEM request; block sizes below keep double-buffered inputs
# + intermediates well under this on v5e/v6e (128 MiB) and v7x (64 MiB).
_VMEM_LIMIT_BYTES = 32 * 1024 * 1024


def _round_up(x, m):
    return ((x + m - 1) // m) * m


def _mosaic_params(*sem):
    return pltpu.CompilerParams(dimension_semantics=sem,
                                vmem_limit_bytes=_VMEM_LIMIT_BYTES)


# ----------------------------------------------------------------------------
# Hyperboloid / Poincare manifold math (HGCN-style).
# Core routines take a precomputed spatial-coordinate mask `m` (hoisted once per
# shape; JAX does not CSE broadcast_in_dim) and an `approx` flag that routes
# divides through pl.reciprocal on the EUP when tracing inside a Pallas kernel.
# cosh/sinh are derived from a single exp (cuts EUP pressure, critical on v5e).
# ----------------------------------------------------------------------------
def _rcp(x, approx=False):
    if approx:
        return pl.reciprocal(x, approx=True)
    return 1.0 / x


def _smask(shape):
    col = jax.lax.broadcasted_iota(jnp.int32, shape, len(shape) - 1)
    return col != 0  # True for spatial coords (everything but the time coord)


def _safe_den(d):
    # sign-preserving clamp (avoids sign flips of tiny negative denominators).
    return jnp.where(d >= 0.0, jnp.maximum(d, MIN_NORM), jnp.minimum(d, -MIN_NORM))


def _arcosh(x):
    return jnp.log(x + jnp.sqrt(jnp.maximum(x * x - 1.0, MIN_NORM)))


def _cosh_sinh(theta, approx=False):
    e = jnp.exp(theta)
    ei = _rcp(e, approx)
    return 0.5 * (e + ei), 0.5 * (e - ei)


def minkowski_dot(x, y):
    return jnp.sum(x * y, axis=-1, keepdims=True) - 2.0 * x[..., 0:1] * y[..., 0:1]


def _proj(x, c, m):
    K = 1.0 / c
    xs = jnp.where(m, x, 0.0)
    t = jnp.sqrt(jnp.maximum(K + jnp.sum(xs * xs, axis=-1, keepdims=True), EPS_F32))
    return jnp.where(m, x, t)


def _expmap0(u, c, m, approx=False):
    K = 1.0 / c
    sqrtK = K ** 0.5
    us = jnp.where(m, u, 0.0)
    xn = jnp.maximum(jnp.sqrt(jnp.sum(us * us, axis=-1, keepdims=True)), MIN_NORM)
    ch, sh = _cosh_sinh(xn * (1.0 / sqrtK), approx)
    res = jnp.where(m, (sqrtK * sh * _rcp(xn, approx)) * u, sqrtK * ch)
    return _proj(res, c, m)


def _logmap0(x, c, m, approx=False):
    K = 1.0 / c
    sqrtK = K ** 0.5
    xs = jnp.where(m, x, 0.0)
    yn = jnp.maximum(jnp.sqrt(jnp.sum(xs * xs, axis=-1, keepdims=True)), MIN_NORM)
    theta = jnp.maximum(x[..., 0:1] * (1.0 / sqrtK), 1.0 + EPS_F32)
    return jnp.where(m, (sqrtK * _arcosh(theta) * _rcp(yn, approx)) * x, 0.0)


def _expmap(u, x, c, m, approx=False):
    K = 1.0 / c
    sqrtK = K ** 0.5
    normu = jnp.minimum(jnp.sqrt(jnp.maximum(minkowski_dot(u, u), EPS_F32)), MAX_NORM)
    theta = jnp.maximum(normu * (1.0 / sqrtK), MIN_NORM)
    ch, sh = _cosh_sinh(theta, approx)
    return _proj(ch * x + sh * (u * _rcp(theta, approx)), c, m)


def _ptransp0(x, u, c, m, approx=False):
    K = 1.0 / c
    sqrtK = K ** 0.5
    x0 = x[..., 0:1]
    xs = jnp.where(m, x, 0.0)
    yn = jnp.maximum(jnp.sqrt(jnp.sum(xs * xs, axis=-1, keepdims=True)), MIN_NORM)
    y_unit = jnp.where(m, x * _rcp(yn, approx), 0.0)
    v = jnp.where(m, (sqrtK - x0) * y_unit, -yn)
    alpha = jnp.sum(y_unit * jnp.where(m, u, 0.0), axis=-1,
                    keepdims=True) * (1.0 / sqrtK)
    return u - alpha * v


def _hyp_linear(x, w_t, hb_log, c, m_in, m_out, approx=False):
    # HGCN HypLinear; hb_log = logmap0(proj(expmap0(proj_tan0(b)))) hoisted.
    # _expmap0 / _expmap already end in _proj, so no extra (idempotent) proj.
    u = _logmap0(x, c, m_in, approx)
    mu = jnp.dot(u, w_t, preferred_element_type=jnp.float32)
    res = _expmap0(mu, c, m_out, approx)
    v = _ptransp0(res, hb_log, c, m_out, approx)        # mobius_add(res, hyp_bias)
    return _expmap(v, res, c, m_out, approx)


def _hyp_relu(x, c, m, approx=False):
    # TODO(synk): HypReLU not defined in the reference; HGCN-style HypAct(ReLU)
    # (logmap0 -> relu -> proj_tan0 -> expmap0 -> proj) assumed.
    u = jnp.where(m, jnp.maximum(_logmap0(x, c, m, approx), 0.0), 0.0)
    return _expmap0(u, c, m, approx)


# plain-JAX wrappers (glue outside kernels)
def hyp_proj(x, c):
    return _proj(x, c, _smask(x.shape))


def hyp_proj_tan0(u, c):
    del c
    return jnp.where(_smask(u.shape), u, 0.0)


def hyp_expmap0(u, c):
    return _expmap0(u, c, _smask(u.shape))


def hyp_logmap0(x, c):
    return _logmap0(x, c, _smask(x.shape))


# ----------------------------------------------------------------------------
# Pallas kernel 1: fused Minkowski similarity + running top-k.
# Grid (B, N_s/tm, N_t/tn); the N_t axis is "arbitrary" and the (1, tm, k)
# value/index output blocks are carried across it (accumulator pattern), so the
# (B, N_s, N_t) similarity matrix is never written to HBM.
# ----------------------------------------------------------------------------
def _sim_topk_kernel(hs_ref, ht_ref, vals_ref, idx_ref, *, n_t):
    j = pl.program_id(2)
    k = vals_ref.shape[2]

    @pl.when(j == 0)
    def _():
        vals_ref[...] = jnp.full(vals_ref.shape, -jnp.inf, jnp.float32)
        idx_ref[...] = jnp.zeros(idx_ref.shape, jnp.int32)

    # Time coordinate of h_s is pre-negated in the wrapper -> pure MXU push:
    #   S_ij = <h_s, h_t> - 2 h_s[...,0] h_t[...,0] = (h_s * g) @ h_t^T
    s = jax.lax.dot_general(hs_ref[0], ht_ref[0], (((1,), (1,)), ((), ())),
                            preferred_element_type=jnp.float32)      # (tm, tn)
    tm, tn = s.shape
    pos_s = jax.lax.broadcasted_iota(jnp.int32, (tm, tn), 1)
    col = j * tn + pos_s
    s = jnp.where(col < n_t, s, -jnp.inf)          # mask padded target columns

    carried_v = vals_ref[0]                        # (tm, k) running top-k
    carried_i = idx_ref[0]
    pos_c = jax.lax.broadcasted_iota(jnp.int32, (tm, k), 1)

    new_v, new_i = [], []
    for _ in range(k):                             # k is tiny and static
        ms = jnp.max(s, axis=1, keepdims=True)
        mc = jnp.max(carried_v, axis=1, keepdims=True)
        use_s = ms >= mc
        first_s = jnp.min(jnp.where(s == ms, pos_s, tn), axis=1, keepdims=True)
        first_c = jnp.min(jnp.where(carried_v == mc, pos_c, k), axis=1,
                          keepdims=True)
        ci_s = jnp.sum(jnp.where(pos_s == first_s, col, 0), axis=1, keepdims=True)
        ci_c = jnp.sum(jnp.where(pos_c == first_c, carried_i, 0), axis=1,
                       keepdims=True)
        new_v.append(jnp.maximum(ms, mc))
        new_i.append(jnp.where(use_s, ci_s, ci_c))
        s = jnp.where(use_s & (pos_s == first_s), -jnp.inf, s)
        carried_v = jnp.where((~use_s) & (pos_c == first_c), -jnp.inf, carried_v)

    out_v = jnp.zeros((tm, k), jnp.float32)
    out_i = jnp.zeros((tm, k), jnp.int32)
    for r in range(k):                             # lane-select assembly (no concat)
        sel = pos_c == r
        out_v = jnp.where(sel, new_v[r], out_v)
        out_i = jnp.where(sel, new_i[r], out_i)
    vals_ref[0] = out_v
    idx_ref[0] = out_i


def _sim_tiles(N_s, N_t):
    N_s_p = _round_up(N_s, 8)
    tm = next(t for t in (256, 128, 64, 32, 16, 8) if N_s_p % t == 0)
    N_t_p = _round_up(N_t, 128)
    tn = next(t for t in (512, 384, 256, 128) if N_t_p % t == 0)
    return N_s_p, tm, N_t_p, tn


def pallas_hyp_topk(h_s, h_t, k):
    B, N_s, C = h_s.shape
    N_t = h_t.shape[1]
    sign = jnp.where(jax.lax.broadcasted_iota(jnp.int32, (1, 1, C), 2) == 0,
                     -1.0, 1.0).astype(h_s.dtype)
    h_s_g = h_s * sign                       # pre-negated time coordinate (once)
    N_s_p, tm, N_t_p, tn = _sim_tiles(N_s, N_t)
    if N_s_p != N_s:
        h_s_g = jnp.pad(h_s_g, ((0, 0), (0, N_s_p - N_s), (0, 0)))
    if N_t_p != N_t:
        h_t = jnp.pad(h_t, ((0, 0), (0, N_t_p - N_t), (0, 0)))
    # TODO(synk): C assumed narrow enough for a single contraction block; very
    # wide embeddings would add a K grid axis with VMEM accumulation.
    vals, idx = pl.pallas_call(
        functools.partial(_sim_topk_kernel, n_t=N_t),
        out_shape=(jax.ShapeDtypeStruct((B, N_s_p, k), jnp.float32),
                   jax.ShapeDtypeStruct((B, N_s_p, k), jnp.int32)),
        grid=(B, N_s_p // tm, N_t_p // tn),
        in_specs=[pl.BlockSpec((1, tm, C), lambda b, i, j: (b, i, 0)),
                  pl.BlockSpec((1, tn, C), lambda b, i, j: (b, j, 0))],
        out_specs=(pl.BlockSpec((1, tm, k), lambda b, i, j: (b, i, 0)),
                   pl.BlockSpec((1, tm, k), lambda b, i, j: (b, i, 0))),
        compiler_params=_mosaic_params("parallel", "parallel", "arbitrary"),
    )(h_s_g, h_t)
    return vals[:, :N_s], idx[:, :N_s]


# ----------------------------------------------------------------------------
# Pallas kernel 2: fused consensus update.
# hyperboloid->Poincare, Mobius co-addition, Poincare->hyperboloid, and the
# hyperbolic MLP (HypLinear->HypReLU->HypLinear); only channel 1 (pre-scaled by
# 1/2) leaves the kernel, emitted as a lane-dense (1, tn) row.
# ----------------------------------------------------------------------------
def _coadd_mlp_kernel(os_ref, otg_ref, w1t_ref, hb1_ref, w2t_ref, hb2_ref,
                      out_ref, *, c, k):
    ap = True                                      # approx reciprocals (EUP)
    K = 1.0 / c
    sqrtK = K ** 0.5

    xs = os_ref[...]                     # (m, R) unique o_s rows (hyperboloid)
    xt = otg_ref[...]                    # (tn, R) o_t rows gathered by S_idx
    m_rows, R = xs.shape
    tn = xt.shape[0]

    m_small = jax.lax.broadcasted_iota(jnp.int32, (m_rows, R), 1) != 0
    m_r = jax.lax.broadcasted_iota(jnp.int32, (tn, R), 1) != 0

    # hyperboloid -> Poincare, full width with the time slot zeroed; done once
    # per unique o_s row, *before* the k-fold repeat.
    ps_small = jnp.where(m_small, sqrtK * xs * _rcp(xs[:, 0:1] + sqrtK, ap), 0.0)
    pt = jnp.where(m_r, sqrtK * xt * _rcp(xt[:, 0:1] + sqrtK, ap), 0.0)

    # k-fold row repeat of ps_small via a constant 0/1 matrix on the MXU: avoids
    # both the HBM jnp.repeat materialization and an in-kernel sublane reshape.
    rowg = jax.lax.broadcasted_iota(jnp.int32, (tn, m_rows), 0)
    colg = jax.lax.broadcasted_iota(jnp.int32, (tn, m_rows), 1)
    rep = jnp.where((rowg >= colg * k) & (rowg < colg * k + k), 1.0, 0.0)
    ps = jnp.dot(rep, ps_small, preferred_element_type=jnp.float32)   # (tn, R)

    # Mobius co-addition of (-ps, pt); the zero time slot is preserved.
    x = -ps
    y = pt
    x2 = jnp.sum(x * x, axis=-1, keepdims=True)
    y2 = jnp.sum(y * y, axis=-1, keepdims=True)
    num = (1.0 - c * y2) * x + (1.0 - c * x2) * y
    D = num * _rcp(_safe_den(1.0 - c * c * x2 * y2), ap)

    # Poincare -> hyperboloid (spatial coords already sit in slots 1..R-1).
    sq = jnp.sum(D * D, axis=-1, keepdims=True)
    inv_hden = _rcp(_safe_den(K - sq), ap)
    Dh = jnp.where(m_r, (2.0 * K) * D * inv_hden, sqrtK * (K + sq) * inv_hden)

    # fused hyperbolic MLP
    w1t = w1t_ref[...]
    w2t = w2t_ref[...]
    H1 = w1t.shape[1]
    H2 = w2t.shape[1]
    m_1 = jax.lax.broadcasted_iota(jnp.int32, (tn, H1), 1) != 0
    m_2 = jax.lax.broadcasted_iota(jnp.int32, (tn, H2), 1) != 0
    h = _hyp_linear(Dh, w1t, hb1_ref[...], c, m_r, m_1, ap)
    h = _hyp_relu(h, c, m_1, ap)
    h = _hyp_linear(h, w2t, hb2_ref[...], c, m_1, m_2, ap)

    # channel 1 * 0.5, relayed out as a lane-dense (1, tn) row via a tiny
    # matmul (avoids masked vst.msk column stores and an explicit transpose).
    selvec = jnp.where(
        jax.lax.broadcasted_iota(jnp.int32, (1, H2), 1) == 1, 0.5, 0.0)
    out_ref[0] = jax.lax.dot_general(
        selvec, h, (((1,), (1,)), ((), ())),
        preferred_element_type=jnp.float32).astype(out_ref.dtype)


def pallas_consensus_delta(o_s, o_t_gath, w1t, hb1_log, w2t, hb2_log, c, k):
    M, R = o_s.shape
    n = M * k
    H1, H2 = w1t.shape[1], w2t.shape[1]
    align = 8 * k                                   # keeps o_s blocks 8-aligned
    n_p = _round_up(n, align)
    tn = align
    for mult in range(max(1, 1024 // align), 0, -1):  # largest tile <= ~1024
        if n_p % (mult * align) == 0:
            tn = mult * align
            break
    M_p = n_p // k
    if M_p != M:
        o_s = jnp.pad(o_s, ((0, M_p - M), (0, 0)))
    if n_p != n:
        o_t_gath = jnp.pad(o_t_gath, ((0, n_p - n), (0, 0)))
    nb = n_p // tn
    out = pl.pallas_call(
        functools.partial(_coadd_mlp_kernel, c=c, k=k),
        out_shape=jax.ShapeDtypeStruct((nb, 1, tn), jnp.float32),
        grid=(nb,),
        in_specs=[pl.BlockSpec((tn // k, R), lambda i: (i, 0)),   # o_s, un-repeated
                  pl.BlockSpec((tn, R), lambda i: (i, 0)),
                  pl.BlockSpec((R, H1), lambda i: (0, 0)),
                  pl.BlockSpec((1, H1), lambda i: (0, 0)),
                  pl.BlockSpec((H1, H2), lambda i: (0, 0)),
                  pl.BlockSpec((1, H2), lambda i: (0, 0))],
        out_specs=pl.BlockSpec((1, 1, tn), lambda i: (i, 0, 0)),
        compiler_params=_mosaic_params("parallel"),
    )(o_s, o_t_gath, w1t, hb1_log, w2t, hb2_log)
    return out.reshape(M_p, k)[:M]


# ----------------------------------------------------------------------------
# Tangent-space linear layer used by the stand-in GNNs (psi_1 / psi_2).
# Tiny layers (as in this model) are cheaper fused by XLA than a Pallas launch;
# large layers go through a tiled Pallas kernel with a fused logmap0 prologue.
# ----------------------------------------------------------------------------
def _tangent_linear_kernel(x_ref, w_ref, o_ref, *, c, hyperbolic_input):
    x = x_ref[...]
    if hyperbolic_input:
        m = jax.lax.broadcasted_iota(jnp.int32, x.shape, 1) != 0
        x = _logmap0(x, c, m, approx=True)
    o_ref[...] = jnp.dot(x, w_ref[...],
                         preferred_element_type=jnp.float32).astype(o_ref.dtype)


def tangent_linear(x, W, c, hyperbolic_input):
    M, K = x.shape
    N = W.shape[1]
    if M < 1024 or K * N < 128 * 128:
        # Pallas launch + ~0.35us/step dominates such a tiny matmul; let XLA
        # fuse logmap0 + dot with the surrounding elementwise / scatter ops.
        u = hyp_logmap0(x, c) if hyperbolic_input else x
        return jnp.dot(u, W, preferred_element_type=jnp.float32)
    tm = 256
    M_p = _round_up(M, tm)
    x_p = jnp.pad(x, ((0, M_p - M), (0, 0))) if M_p != M else x
    # TODO(synk): very wide K would need a K grid axis + VMEM f32 accumulator.
    out = pl.pallas_call(
        functools.partial(_tangent_linear_kernel, c=c,
                          hyperbolic_input=hyperbolic_input),
        out_shape=jax.ShapeDtypeStruct((M_p, N), jnp.float32),
        grid=(M_p // tm,),
        in_specs=[pl.BlockSpec((tm, K), lambda i: (i, 0)),
                  pl.BlockSpec((K, N), lambda i: (0, 0))],
        out_specs=pl.BlockSpec((tm, N), lambda i: (i, 0)),
        compiler_params=_mosaic_params("parallel"),
    )(x_p, W)
    return out[:M]


# ----------------------------------------------------------------------------
# Synthetic stand-in for psi_1 / psi_2 (the reference does not define them):
# tangent-space linear layer + one-hop sum aggregation, mapped back onto the
# hyperboloid.  Exposes in_channels / out_channels / c.
# ----------------------------------------------------------------------------
class SimpleHypGNN:
    def __init__(self, key, in_channels, out_channels, c, hyperbolic_input):
        self.in_channels = in_channels
        self.out_channels = out_channels
        self.c = c
        self.manifold = "hyperboloid"
        self.hyperbolic_input = hyperbolic_input
        self.W = (jax.random.normal(key, (in_channels, out_channels), jnp.float32)
                  / math.sqrt(in_channels))

    def __call__(self, x, edge_index, sizes=None):
        del sizes
        h = tangent_linear(x, self.W, self.c, self.hyperbolic_input)
        src, dst = edge_index[0], edge_index[1]
        # TODO(synk): data-dependent scatter-add kept in plain JAX.
        agg = jnp.zeros_like(h).at[dst].add(h[src])
        t = hyp_proj_tan0(h + agg, self.c)
        return hyp_expmap0(t, self.c)           # expmap0 already ends in proj


# ----------------------------------------------------------------------------
# HDGMC
# ----------------------------------------------------------------------------
class HDGMC:
    def __init__(self, psi_1, psi_2, num_steps, k, key):
        self.psi_1 = psi_1
        self.psi_2 = psi_2
        self.num_steps = num_steps
        self.k = k
        self.c = psi_1.c
        R_out = psi_2.out_channels
        k1, k2, k3 = jax.random.split(key, 3)
        # mlp = HypLinear(R_out, 10) -> HypReLU -> HypLinear(10, 2)
        lim1 = math.sqrt(6.0 / (10 + R_out))
        W1 = jax.random.uniform(k1, (10, R_out), jnp.float32, -lim1, lim1)
        b1 = jnp.zeros((1, 10), jnp.float32)
        lim2 = math.sqrt(6.0 / (2 + 10))
        W2 = jax.random.uniform(k2, (2, 10), jnp.float32, -lim2, lim2)
        b2 = jnp.zeros((1, 2), jnp.float32)
        c = self.c
        # hoisted once: transposed weights + tangent-space image of the
        # hyperbolic biases (logmap0(proj(expmap0(proj_tan0(b))))).
        self.W1t = W1.T                                   # (R_out, 10)
        self.W2t = W2.T                                   # (10, 2)
        self.hb1_log = hyp_logmap0(
            hyp_proj(hyp_expmap0(hyp_proj_tan0(b1, c), c), c), c)
        self.hb2_log = hyp_logmap0(
            hyp_proj(hyp_expmap0(hyp_proj_tan0(b2, c), c), c), c)
        self.rng = k3

    def __call__(self, x_s, edge_index_s, batch_size, x_t, edge_index_t):
        c = self.c
        h_s_flat = self.psi_1(x_s, edge_index_s)
        h_t_flat = self.psi_1(x_t, edge_index_t)
        h_s_len = h_s_flat.shape[0]
        B = batch_size
        N_s = h_s_len // B
        N_t = h_t_flat.shape[0] // B
        C_out = h_s_flat.shape[-1]
        R_in, R_out = self.psi_2.in_channels, self.psi_2.out_channels

        # to_dense_batch with equal-sized graphs == reshape; masks are all-True.
        h_s = h_s_flat.reshape(B, N_s, C_out)
        h_t = h_t_flat.reshape(B, N_t, C_out)

        # __top_k__: fused Minkowski similarity + running top-k (Pallas).
        # Top-k values are reused directly as S_hat (no re-gather of S_ij).
        vals, S_idx = pallas_hyp_topk(h_s, h_t, self.k)     # (B, N_s, k) each
        k = S_idx.shape[-1]
        S_hat = vals.reshape(B * N_s, k)
        # k is tiny (e.g. 4): the row softmax is left to XLA.
        S = jax.nn.softmax(S_hat, axis=-1)
        S_0 = S

        idx = S_idx.reshape(B, N_s * k)
        rng = self.rng
        for _ in range(self.num_steps):
            rng, sub = jax.random.split(rng)
            r_s = jax.random.normal(sub, (B, N_s, R_in), jnp.float32) / (2 * R_in)
            S_b = S.reshape(B, N_s, k)
            tmp_t = (r_s[:, :, None, :] * S_b[:, :, :, None]).reshape(B, N_s * k, R_in)
            # TODO(synk): data-dependent scatter-add kept in plain JAX.
            r_t = jax.vmap(
                lambda t, i: jnp.zeros((N_t, R_in), t.dtype).at[i].add(t))(tmp_t, idx)
            r_s = hyp_expmap0(r_s, c)              # expmap0 already ends in proj
            r_t = hyp_expmap0(r_t, c)
            o_s = self.psi_2(r_s.reshape(B * N_s, R_in), edge_index_s)   # (B*N_s, R_out)
            o_t = self.psi_2(r_t.reshape(B * N_t, R_in), edge_index_t)   # (B*N_t, R_out)
            # TODO(synk): data-dependent row gather kept in plain JAX.
            gidx = jnp.broadcast_to(idx[:, :, None], (B, N_s * k, R_out))
            o_t_g = jnp.take_along_axis(
                o_t.reshape(B, N_t, R_out), gidx, axis=1).reshape(B * N_s * k, R_out)
            # fused Poincare co-add -> hyperboloid -> hyperbolic MLP -> channel 1 / 2
            delta = pallas_consensus_delta(o_s, o_t_g, self.W1t, self.hb1_log,
                                           self.W2t, self.hb2_log, c, k)
            S_hat = S_hat + delta
            S = jax.nn.softmax(S_hat, axis=-1)

        S_L = S
        S_idx_flat = S_idx.reshape(B * N_s, k)
        row = jnp.repeat(jnp.arange(h_s_len), k)
        coo_idx = jnp.stack([row, S_idx_flat.reshape(-1)], axis=0)
        # TODO(synk): torch.sparse_coo_tensor has no JAX equivalent; return COO parts.
        return {"idx": coo_idx, "S_idx": S_idx_flat, "S_0": S_0, "S_L": S_L,
                "size": (h_s_len, N_t)}


if __name__ == "__main__":
    B, N, C_in, C_out = 2, 8, 8, 8
    R_in, R_out, K_SPARSE, NUM_STEPS = 8, 8, 4, 2

    key = jax.random.PRNGKey(0)
    k_xs, k_xt, k_p1, k_p2, k_m = jax.random.split(key, 5)
    x_s = jax.random.normal(k_xs, (B * N, C_in), jnp.float32)
    x_t = jax.random.normal(k_xt, (B * N, C_in), jnp.float32)

    # Ring edges within each graph (deterministic topology).
    node = jnp.arange(B * N)
    graph = node // N
    edge_index_s = jnp.stack(
        [node, graph * N + (node % N + 1) % N], axis=0).astype(jnp.int32)
    edge_index_t = jnp.stack(
        [node, graph * N + (node % N + 2) % N], axis=0).astype(jnp.int32)

    psi_1 = SimpleHypGNN(k_p1, C_in, C_out, C_CURV, hyperbolic_input=False)
    psi_2 = SimpleHypGNN(k_p2, R_in, R_out, C_CURV, hyperbolic_input=True)
    model = HDGMC(psi_1, psi_2, NUM_STEPS, K_SPARSE, k_m)

    out = model(x_s, edge_index_s, B, x_t, edge_index_t)
    jax.block_until_ready((out["S_0"], out["S_L"], out["idx"], out["S_idx"]))

    assert out["S_0"].shape == (B * N, K_SPARSE)
    assert out["S_L"].shape == (B * N, K_SPARSE)
    assert out["S_idx"].shape == (B * N, K_SPARSE)
    assert bool(jnp.all(jnp.isfinite(out["S_0"])))
    assert bool(jnp.all(jnp.isfinite(out["S_L"])))
    assert bool(jnp.all((out["S_idx"] >= 0) & (out["S_idx"] < N)))
    print("KERNEL_OK")
</pallas_src>

<mosaic_0001>
module attributes {stable_mosaic.version = 11 : i64} {
  func.func @_sim_topk_kernel(%arg0: i32, %arg1: i32, %arg2: i32, %arg3: memref<1x8x8xf32, #tpu.memory_space<vmem>>, %arg4: memref<1x128x8xf32, #tpu.memory_space<vmem>>, %arg5: memref<1x8x4xf32, #tpu.memory_space<vmem>>, %arg6: memref<1x8x4xi32, #tpu.memory_space<vmem>>) attributes {dimension_semantics = [#tpu.dimension_semantics<parallel>, #tpu.dimension_semantics<parallel>, #tpu.dimension_semantics<arbitrary>], iteration_bounds = array<i64: 2, 1, 1>, scalar_prefetch = 0 : i64, scratch_operands = 0 : i64, tpu.core_type = #tpu.core_type<tc>, window_params = [{transform_indices = @transform_0, window_bounds = array<i64: 1, 8, 8>}, {transform_indices = @transform_1, window_bounds = array<i64: 1, 128, 8>}, {transform_indices = @transform_2, window_bounds = array<i64: 1, 8, 4>}, {transform_indices = @transform_3, window_bounds = array<i64: 1, 8, 4>}]} {
    %c0_i32 = arith.constant 0 : i32
    %0 = arith.cmpi eq, %arg2, %c0_i32 : i32
    %1 = arith.extui %0 : i1 to i32
    %c0_i32_0 = arith.constant 0 : i32
    %2 = arith.cmpi ne, %1, %c0_i32_0 : i32
    scf.if %2 {
      %cst_70 = arith.constant 0xFF800000 : f32
      %224 = vector.broadcast %cst_70 : f32 to vector<1x8x4xf32>
      %c0_71 = arith.constant 0 : index
      %c0_72 = arith.constant 0 : index
      %c0_73 = arith.constant 0 : index
      %225 = vector.load %arg5[%c0_71, %c0_72, %c0_73] : memref<1x8x4xf32, #tpu.memory_space<vmem>>, vector<1x8x4xf32>
      tpu.vector_store %arg5[%c0_71, %c0_72, %c0_73], %224 {strides = array<i32>} : memref<1x8x4xf32, #tpu.memory_space<vmem>>, vector<1x8x4xf32>,
      %c0_i32_74 = arith.constant 0 : i32
      %226 = vector.broadcast %c0_i32_74 : i32 to vector<1x8x4xi32>
      %c0_75 = arith.constant 0 : index
      %c0_76 = arith.constant 0 : index
      %c0_77 = arith.constant 0 : index
      %227 = vector.load %arg6[%c0_75, %c0_76, %c0_77] : memref<1x8x4xi32, #tpu.memory_space<vmem>>, vector<1x8x4xi32>
      tpu.vector_store %arg6[%c0_75, %c0_76, %c0_77], %226 {strides = array<i32>} : memref<1x8x4xi32, #tpu.memory_space<vmem>>, vector<1x8x4xi32>,
    } else {
    }
    %c0 = arith.constant 0 : index
    %c0_1 = arith.constant 0 : index
    %c0_2 = arith.constant 0 : index
    %3 = vector.load %arg3[%c0, %c0_1, %c0_2] : memref<1x8x8xf32, #tpu.memory_space<vmem>>, vector<1x8x8xf32>
    %4 = vector.shape_cast %3 : vector<1x8x8xf32> to vector<8x8xf32>
    %c0_3 = arith.constant 0 : index
    %c0_4 = arith.constant 0 : index
    %c0_5 = arith.constant 0 : index
    %5 = vector.load %arg4[%c0_3, %c0_4, %c0_5] : memref<1x128x8xf32, #tpu.memory_space<vmem>>, vector<1x128x8xf32>
    %6 = vector.shape_cast %5 : vector<1x128x8xf32> to vector<128x8xf32>
    %cst = arith.constant dense<0.000000e+00> : vector<8x128xf32>
    %7 = tpu.matmul %4, %6, %cst {dimension_numbers = #tpu.dot_dimension_numbers<[1], [1], [0], [0], [0, 0, 1, 0], [], []>} : vector<8x8xf32>, vector<128x8xf32>, vector<8x128xf32> -> vector<8x128xf32>
    %8 = tpu.iota {dimensions = array<i32: 1>} : vector<8x128xi32>
    %c128_i32 = arith.constant 128 : i32
    %9 = arith.muli %arg2, %c128_i32 : i32
    %10 = vector.broadcast %9 : i32 to vector<8x128xi32>
    %11 = arith.addi %10, %8 : vector<8x128xi32>
    %c8_i32 = arith.constant 8 : i32
    %12 = vector.broadcast %c8_i32 : i32 to vector<8x128xi32>
    %13 = arith.cmpi slt, %11, %12 : vector<8x128xi32>
    %cst_6 = arith.constant 0xFF800000 : f32
    %14 = vector.broadcast %cst_6 : f32 to vector<8x128xf32>
    %15 = arith.select %13, %7, %14 : vector<8x128xi1>, vector<8x128xf32>
    %c0_7 = arith.constant 0 : index
    %c0_8 = arith.constant 0 : index
    %c0_9 = arith.constant 0 : index
    %16 = vector.load %arg5[%c0_7, %c0_8, %c0_9] : memref<1x8x4xf32, #tpu.memory_space<vmem>>, vector<1x8x4xf32>
    %17 = vector.shape_cast %16 : vector<1x8x4xf32> to vector<8x4xf32>
    %c0_10 = arith.constant 0 : index
    %c0_11 = arith.constant 0 : index
    %c0_12 = arith.constant 0 : index
    %18 = vector.load %arg6[%c0_10, %c0_11, %c0_12] : memref<1x8x4xi32, #tpu.memory_space<vmem>>, vector<1x8x4xi32>
    %19 = vector.shape_cast %18 : vector<1x8x4xi32> to vector<8x4xi32>
    %20 = tpu.iota {dimensions = array<i32: 1>} : vector<8x4xi32>
    %cst_13 = arith.constant dense<0xFF800000> : vector<8xf32>
    %21 = vector.multi_reduction <maximumf>, %15, %cst_13 [1] : vector<8x128xf32> to vector<8xf32>
    %22 = vector.shape_cast %21 : vector<8xf32> to vector<8x1xf32>
    %cst_14 = arith.constant dense<0xFF800000> : vector<8xf32>
    %23 = vector.multi_reduction <maximumf>, %17, %cst_14 [1] : vector<8x4xf32> to vector<8xf32>
    %24 = vector.shape_cast %23 : vector<8xf32> to vector<8x1xf32>
    %25 = arith.cmpf oge, %22, %24 : vector<8x1xf32>
    %26 = vector.broadcast %22 : vector<8x1xf32> to vector<8x128xf32>
    %27 = arith.cmpf oeq, %15, %26 : vector<8x128xf32>
    %c128_i32_15 = arith.constant 128 : i32
    %28 = vector.broadcast %c128_i32_15 : i32 to vector<8x128xi32>
    %29 = arith.select %27, %8, %28 : vector<8x128xi1>, vector<8x128xi32>
    %cst_16 = arith.constant dense<2147483647> : vector<8xi32>
    %30 = vector.multi_reduction <minsi>, %29, %cst_16 [1] : vector<8x128xi32> to vector<8xi32>
    %31 = vector.shape_cast %30 : vector<8xi32> to vector<8x1xi32>
    %32 = vector.broadcast %24 : vector<8x1xf32> to vector<8x4xf32>
    %33 = arith.cmpf oeq, %17, %32 : vector<8x4xf32>
    %c4_i32 = arith.constant 4 : i32
    %34 = vector.broadcast %c4_i32 : i32 to vector<8x4xi32>
    %35 = arith.select %33, %20, %34 : vector<8x4xi1>, vector<8x4xi32>
    %cst_17 = arith.constant dense<2147483647> : vector<8xi32>
    %36 = vector.multi_reduction <minsi>, %35, %cst_17 [1] : vector<8x4xi32> to vector<8xi32>
    %37 = vector.shape_cast %36 : vector<8xi32> to vector<8x1xi32>
    %38 = vector.broadcast %31 : vector<8x1xi32> to vector<8x128xi32>
    %39 = arith.cmpi eq, %8, %38 : vector<8x128xi32>
    %c0_i32_18 = arith.constant 0 : i32
    %40 = vector.broadcast %c0_i32_18 : i32 to vector<8x128xi32>
    %41 = arith.select %39, %11, %40 : vector<8x128xi1>, vector<8x128xi32>
    %cst_19 = arith.constant dense<0> : vector<8xi32>
    %42 = vector.multi_reduction <add>, %41, %cst_19 [1] : vector<8x128xi32> to vector<8xi32>
    %43 = vector.shape_cast %42 : vector<8xi32> to vector<8x1xi32>
    %44 = vector.broadcast %37 : vector<8x1xi32> to vector<8x4xi32>
    %45 = arith.cmpi eq, %20, %44 : vector<8x4xi32>
    %c0_i32_20 = arith.constant 0 : i32
    %46 = vector.broadcast %c0_i32_20 : i32 to vector<8x4xi32>
    %47 = arith.select %45, %19, %46 : vector<8x4xi1>, vector<8x4xi32>
    %cst_21 = arith.constant dense<0> : vector<8xi32>
    %48 = vector.multi_reduction <add>, %47, %cst_21 [1] : vector<8x4xi32> to vector<8xi32>
    %49 = vector.shape_cast %48 : vector<8xi32> to vector<8x1xi32>
    %50 = arith.maximumf %22, %24 : vector<8x1xf32>
    %51 = arith.select %25, %43, %49 : vector<8x1xi1>, vector<8x1xi32>
    %52 = vector.broadcast %31 : vector<8x1xi32> to vector<8x128xi32>
    %53 = arith.cmpi eq, %8, %52 : vector<8x128xi32>
    %54 = vector.broadcast %25 : vector<8x1xi1> to vector<8x128xi1>
    %55 = arith.andi %54, %53 : vector<8x128xi1>
    %cst_22 = arith.constant 0xFF800000 : f32
    %56 = vector.broadcast %cst_22 : f32 to vector<8x128xf32>
    %57 = arith.select %55, %56, %15 : vector<8x128xi1>, vector<8x128xf32>
    %cst_23 = arith.constant dense<true> : vector<8x1xi1>
    %58 = arith.xori %25, %cst_23 : vector<8x1xi1>
    %59 = vector.broadcast %37 : vector<8x1xi32> to vector<8x4xi32>
    %60 = arith.cmpi eq, %20, %59 : vector<8x4xi32>
    %61 = vector.broadcast %58 : vector<8x1xi1> to vector<8x4xi1>
    %62 = arith.andi %61, %60 : vector<8x4xi1>
    %cst_24 = arith.constant 0xFF800000 : f32
    %63 = vector.broadcast %cst_24 : f32 to vector<8x4xf32>
    %64 = arith.select %62, %63, %17 : vector<8x4xi1>, vector<8x4xf32>
    %cst_25 = arith.constant dense<0xFF800000> : vector<8xf32>
    %65 = vector.multi_reduction <maximumf>, %57, %cst_25 [1] : vector<8x128xf32> to vector<8xf32>
    %66 = vector.shape_cast %65 : vector<8xf32> to vector<8x1xf32>
    %cst_26 = arith.constant dense<0xFF800000> : vector<8xf32>
    %67 = vector.multi_reduction <maximumf>, %64, %cst_26 [1] : vector<8x4xf32> to vector<8xf32>
    %68 = vector.shape_cast %67 : vector<8xf32> to vector<8x1xf32>
    %69 = arith.cmpf oge, %66, %68 : vector<8x1xf32>
    %70 = vector.broadcast %66 : vector<8x1xf32> to vector<8x128xf32>
    %71 = arith.cmpf oeq, %57, %70 : vector<8x128xf32>
    %c128_i32_27 = arith.constant 128 : i32
    %72 = vector.broadcast %c128_i32_27 : i32 to vector<8x128xi32>
    %73 = arith.select %71, %8, %72 : vector<8x128xi1>, vector<8x128xi32>
    %cst_28 = arith.constant dense<2147483647> : vector<8xi32>
    %74 = vector.multi_reduction <minsi>, %73, %cst_28 [1] : vector<8x128xi32> to vector<8xi32>
    %75 = vector.shape_cast %74 : vector<8xi32> to vector<8x1xi32>
    %76 = vector.broadcast %68 : vector<8x1xf32> to vector<8x4xf32>
    %77 = arith.cmpf oeq, %64, %76 : vector<8x4xf32>
    %c4_i32_29 = arith.constant 4 : i32
    %78 = vector.broadcast %c4_i32_29 : i32 to vector<8x4xi32>
    %79 = arith.select %77, %20, %78 : vector<8x4xi1>, vector<8x4xi32>
    %cst_30 = arith.constant dense<2147483647> : vector<8xi32>
    %80 = vector.multi_reduction <minsi>, %79, %cst_30 [1] : vector<8x4xi32> to vector<8xi32>
    %81 = vector.shape_cast %80 : vector<8xi32> to vector<8x1xi32>
    %82 = vector.broadcast %75 : vector<8x1xi32> to vector<8x128xi32>
    %83 = arith.cmpi eq, %8, %82 : vector<8x128xi32>
    %c0_i32_31 = arith.constant 0 : i32
    %84 = vector.broadcast %c0_i32_31 : i32 to vector<8x128xi32>
    %85 = arith.select %83, %11, %84 : vector<8x128xi1>, vector<8x128xi32>
    %cst_32 = arith.constant dense<0> : vector<8xi32>
    %86 = vector.multi_reduction <add>, %85, %cst_32 [1] : vector<8x128xi32> to vector<8xi32>
    %87 = vector.shape_cast %86 : vector<8xi32> to vector<8x1xi32>
    %88 = vector.broadcast %81 : vector<8x1xi32> to vector<8x4xi32>
    %89 = arith.cmpi eq, %20, %88 : vector<8x4xi32>
    %c0_i32_33 = arith.constant 0 : i32
    %90 = vector.broadcast %c0_i32_33 : i32 to vector<8x4xi32>
    %91 = arith.select %89, %19, %90 : vector<8x4xi1>, vector<8x4xi32>
    %cst_34 = arith.constant dense<0> : vector<8xi32>
    %92 = vector.multi_reduction <add>, %91, %cst_34 [1] : vector<8x4xi32> to vector<8xi32>
    %93 = vector.shape_cast %92 : vector<8xi32> to vector<8x1xi32>
    %94 = arith.maximumf %66, %68 : vector<8x1xf32>
    %95 = arith.select %69, %87, %93 : vector<8x1xi1>, vector<8x1xi32>
    %96 = vector.broadcast %75 : vector<8x1xi32> to vector<8x128xi32>
    %97 = arith.cmpi eq, %8, %96 : vector<8x128xi32>
    %98 = vector.broadcast %69 : vector<8x1xi1> to vector<8x128xi1>
    %99 = arith.andi %98, %97 : vector<8x128xi1>
    %cst_35 = arith.constant 0xFF800000 : f32
    %100 = vector.broadcast %cst_35 : f32 to vector<8x128xf32>
    %101 = arith.select %99, %100, %57 : vector<8x128xi1>, vector<8x128xf32>
    %cst_36 = arith.constant dense<true> : vector<8x1xi1>
    %102 = arith.xori %69, %cst_36 : vector<8x1xi1>
    %103 = vector.broadcast %81 : vector<8x1xi32> to vector<8x4xi32>
    %104 = arith.cmpi eq, %20, %103 : vector<8x4xi32>
    %105 = vector.broadcast %102 : vector<8x1xi1> to vector<8x4xi1>
    %106 = arith.andi %105, %104 : vector<8x4xi1>
    %cst_37 = arith.constant 0xFF800000 : f32
    %107 = vector.broadcast %cst_37 : f32 to vector<8x4xf32>
    %108 = arith.select %106, %107, %64 : vector<8x4xi1>, vector<8x4xf32>
    %cst_38 = arith.constant dense<0xFF800000> : vector<8xf32>
    %109 = vector.multi_reduction <maximumf>, %101, %cst_38 [1] : vector<8x128xf32> to vector<8xf32>
    %110 = vector.shape_cast %109 : vector<8xf32> to vector<8x1xf32>
    %cst_39 = arith.constant dense<0xFF800000> : vector<8xf32>
    %111 = vector.multi_reduction <maximumf>, %108, %cst_39 [1] : vector<8x4xf32> to vector<8xf32>
    %112 = vector.shape_cast %111 : vector<8xf32> to vector<8x1xf32>
    %113 = arith.cmpf oge, %110, %112 : vector<8x1xf32>
    %114 = vector.broadcast %110 : vector<8x1xf32> to vector<8x128xf32>
    %115 = arith.cmpf oeq, %101, %114 : vector<8x128xf32>
    %c128_i32_40 = arith.constant 128 : i32
    %116 = vector.broadcast %c128_i32_40 : i32 to vector<8x128xi32>
    %117 = arith.select %115, %8, %116 : vector<8x128xi1>, vector<8x128xi32>
    %cst_41 = arith.constant dense<2147483647> : vector<8xi32>
    %118 = vector.multi_reduction <minsi>, %117, %cst_41 [1] : vector<8x128xi32> to vector<8xi32>
    %119 = vector.shape_cast %118 : vector<8xi32> to vector<8x1xi32>
    %120 = vector.broadcast %112 : vector<8x1xf32> to vector<8x4xf32>
    %121 = arith.cmpf oeq, %108, %120 : vector<8x4xf32>
    %c4_i32_42 = arith.constant 4 : i32
    %122 = vector.broadcast %c4_i32_42 : i32 to vector<8x4xi32>
    %123 = arith.select %121, %20, %122 : vector<8x4xi1>, vector<8x4xi32>
    %cst_43 = arith.constant dense<2147483647> : vector<8xi32>
    %124 = vector.multi_reduction <minsi>, %123, %cst_43 [1] : vector<8x4xi32> to vector<8xi32>
    %125 = vector.shape_cast %124 : vector<8xi32> to vector<8x1xi32>
    %126 = vector.broadcast %119 : vector<8x1xi32> to vector<8x128xi32>
    %127 = arith.cmpi eq, %8, %126 : vector<8x128xi32>
    %c0_i32_44 = arith.constant 0 : i32
    %128 = vector.broadcast %c0_i32_44 : i32 to vector<8x128xi32>
    %129 = arith.select %127, %11, %128 : vector<8x128xi1>, vector<8x128xi32>
    %cst_45 = arith.constant dense<0> : vector<8xi32>
    %130 = vector.multi_reduction <add>, %129, %cst_45 [1] : vector<8x128xi32> to vector<8xi32>
    %131 = vector.shape_cast %130 : vector<8xi32> to vector<8x1xi32>
    %132 = vector.broadcast %125 : vector<8x1xi32> to vector<8x4xi32>
    %133 = arith.cmpi eq, %20, %132 : vector<8x4xi32>
    %c0_i32_46 = arith.constant 0 : i32
    %134 = vector.broadcast %c0_i32_46 : i32 to vector<8x4xi32>
    %135 = arith.select %133, %19, %134 : vector<8x4xi1>, vector<8x4xi32>
    %cst_47 = arith.constant dense<0> : vector<8xi32>
    %136 = vector.multi_reduction <add>, %135, %cst_47 [1] : vector<8x4xi32> to vector<8xi32>
    %137 = vector.shape_cast %136 : vector<8xi32> to vector<8x1xi32>
    %138 = arith.maximumf %110, %112 : vector<8x1xf32>
    %139 = arith.select %113, %131, %137 : vector<8x1xi1>, vector<8x1xi32>
    %140 = vector.broadcast %119 : vector<8x1xi32> to vector<8x128xi32>
    %141 = arith.cmpi eq, %8, %140 : vector<8x128xi32>
    %142 = vector.broadcast %113 : vector<8x1xi1> to vector<8x128xi1>
    %143 = arith.andi %142, %141 : vector<8x128xi1>
    %cst_48 = arith.constant 0xFF800000 : f32
    %144 = vector.broadcast %cst_48 : f32 to vector<8x128xf32>
    %145 = arith.select %143, %144, %101 : vector<8x128xi1>, vector<8x128xf32>
    %cst_49 = arith.constant dense<true> : vector<8x1xi1>
    %146 = arith.xori %113, %cst_49 : vector<8x1xi1>
    %147 = vector.broadcast %125 : vector<8x1xi32> to vector<8x4xi32>
    %148 = arith.cmpi eq, %20, %147 : vector<8x4xi32>
    %149 = vector.broadcast %146 : vector<8x1xi1> to vector<8x4xi1>
    %150 = arith.andi %149, %148 : vector<8x4xi1>
    %cst_50 = arith.constant 0xFF800000 : f32
    %151 = vector.broadcast %cst_50 : f32 to vector<8x4xf32>
    %152 = arith.select %150, %151, %108 : vector<8x4xi1>, vector<8x4xf32>
    %cst_51 = arith.constant dense<0xFF800000> : vector<8xf32>
    %153 = vector.multi_reduction <maximumf>, %145, %cst_51 [1] : vector<8x128xf32> to vector<8xf32>
    %154 = vector.shape_cast %153 : vector<8xf32> to vector<8x1xf32>
    %cst_52 = arith.constant dense<0xFF800000> : vector<8xf32>
    %155 = vector.multi_reduction <maximumf>, %152, %cst_52 [1] : vector<8x4xf32> to vector<8xf32>
    %156 = vector.shape_cast %155 : vector<8xf32> to vector<8x1xf32>
    %157 = arith.cmpf oge, %154, %156 : vector<8x1xf32>
    %158 = vector.broadcast %154 : vector<8x1xf32> to vector<8x128xf32>
    %159 = arith.cmpf oeq, %145, %158 : vector<8x128xf32>
    %c128_i32_53 = arith.constant 128 : i32
    %160 = vector.broadcast %c128_i32_53 : i32 to vector<8x128xi32>
    %161 = arith.select %159, %8, %160 : vector<8x128xi1>, vector<8x128xi32>
    %cst_54 = arith.constant dense<2147483647> : vector<8xi32>
    %162 = vector.multi_reduction <minsi>, %161, %cst_54 [1] : vector<8x128xi32> to vector<8xi32>
    %163 = vector.shape_cast %162 : vector<8xi32> to vector<8x1xi32>
    %164 = vector.broadcast %156 : vector<8x1xf32> to vector<8x4xf32>
    %165 = arith.cmpf oeq, %152, %164 : vector<8x4xf32>
    %c4_i32_55 = arith.constant 4 : i32
    %166 = vector.broadcast %c4_i32_55 : i32 to vector<8x4xi32>
    %167 = arith.select %165, %20, %166 : vector<8x4xi1>, vector<8x4xi32>
    %cst_56 = arith.constant dense<2147483647> : vector<8xi32>
    %168 = vector.multi_reduction <minsi>, %167, %cst_56 [1] : vector<8x4xi32> to vector<8xi32>
    %169 = vector.shape_cast %168 : vector<8xi32> to vector<8x1xi32>
    %170 = vector.broadcast %163 : vector<8x1xi32> to vector<8x128xi32>
    %171 = arith.cmpi eq, %8, %170 : vector<8x128xi32>
    %c0_i32_57 = arith.constant 0 : i32
    %172 = vector.broadcast %c0_i32_57 : i32 to vector<8x128xi32>
    %173 = arith.select %171, %11, %172 : vector<8x128xi1>, vector<8x128xi32>
    %cst_58 = arith.constant dense<0> : vector<8xi32>
    %174 = vector.multi_reduction <add>, %173, %cst_58 [1] : vector<8x128xi32> to vector<8xi32>
    %175 = vector.shape_cast %174 : vector<8xi32> to vector<8x1xi32>
    %176 = vector.broadcast %169 : vector<8x1xi32> to vector<8x4xi32>
    %177 = arith.cmpi eq, %20, %176 : vector<8x4xi32>
    %c0_i32_59 = arith.constant 0 : i32
    %178 = vector.broadcast %c0_i32_59 : i32 to vector<8x4xi32>
    %179 = arith.select %177, %19, %178 : vector<8x4xi1>, vector<8x4xi32>
    %cst_60 = arith.constant dense<0> : vector<8xi32>
    %180 = vector.multi_reduction <add>, %179, %cst_60 [1] : vector<8x4xi32> to vector<8xi32>
    %181 = vector.shape_cast %180 : vector<8xi32> to vector<8x1xi32>
    %182 = arith.maximumf %154, %156 : vector<8x1xf32>
    %183 = arith.select %157, %175, %181 : vector<8x1xi1>, vector<8x1xi32>
    %cst_61 = arith.constant 0.000000e+00 : f32
    %184 = vector.broadcast %cst_61 : f32 to vector<8x4xf32>
    %c0_i32_62 = arith.constant 0 : i32
    %185 = vector.broadcast %c0_i32_62 : i32 to vector<8x4xi32>
    %c0_i32_63 = arith.constant 0 : i32
    %186 = vector.broadcast %c0_i32_63 : i32 to vector<8x4xi32>
    %187 = arith.cmpi eq, %20, %186 : vector<8x4xi32>
    %188 = vector.shape_cast %50 : vector<8x1xf32> to vector<8x1xf32>
    %189 = vector.broadcast %188 : vector<8x1xf32> to vector<8x4xf32>
    %190 = arith.select %187, %189, %184 : vector<8x4xi1>, vector<8x4xf32>
    %191 = vector.shape_cast %51 : vector<8x1xi32> to vector<8x1xi32>
    %192 = vector.broadcast %191 : vector<8x1xi32> to vector<8x4xi32>
    %193 = arith.select %187, %192, %185 : vector<8x4xi1>, vector<8x4xi32>
    %c1_i32 = arith.constant 1 : i32
    %194 = vector.broadcast %c1_i32 : i32 to vector<8x4xi32>
    %195 = arith.cmpi eq, %20, %194 : vector<8x4xi32>
    %196 = vector.shape_cast %94 : vector<8x1xf32> to vector<8x1xf32>
    %197 = vector.broadcast %196 : vector<8x1xf32> to vector<8x4xf32>
    %198 = arith.select %195, %197, %190 : vector<8x4xi1>, vector<8x4xf32>
    %199 = vector.shape_cast %95 : vector<8x1xi32> to vector<8x1xi32>
    %200 = vector.broadcast %199 : vector<8x1xi32> to vector<8x4xi32>
    %201 = arith.select %195, %200, %193 : vector<8x4xi1>, vector<8x4xi32>
    %c2_i32 = arith.constant 2 : i32
    %202 = vector.broadcast %c2_i32 : i32 to vector<8x4xi32>
    %203 = arith.cmpi eq, %20, %202 : vector<8x4xi32>
    %204 = vector.shape_cast %138 : vector<8x1xf32> to vector<8x1xf32>
    %205 = vector.broadcast %204 : vector<8x1xf32> to vector<8x4xf32>
    %206 = arith.select %203, %205, %198 : vector<8x4xi1>, vector<8x4xf32>
    %207 = vector.shape_cast %139 : vector<8x1xi32> to vector<8x1xi32>
    %208 = vector.broadcast %207 : vector<8x1xi32> to vector<8x4xi32>
    %209 = arith.select %203, %208, %201 : vector<8x4xi1>, vector<8x4xi32>
    %c3_i32 = arith.constant 3 : i32
    %210 = vector.broadcast %c3_i32 : i32 to vector<8x4xi32>
    %211 = arith.cmpi eq, %20, %210 : vector<8x4xi32>
    %212 = vector.shape_cast %182 : vector<8x1xf32> to vector<8x1xf32>
    %213 = vector.broadcast %212 : vector<8x1xf32> to vector<8x4xf32>
    %214 = arith.select %211, %213, %206 : vector<8x4xi1>, vector<8x4xf32>
    %215 = vector.shape_cast %183 : vector<8x1xi32> to vector<8x1xi32>
    %216 = vector.broadcast %215 : vector<8x1xi32> to vector<8x4xi32>
    %217 = arith.select %211, %216, %209 : vector<8x4xi1>, vector<8x4xi32>
    %c0_64 = arith.constant 0 : index
    %c0_65 = arith.constant 0 : index
    %c0_66 = arith.constant 0 : index
    %218 = vector.load %arg5[%c0_64, %c0_65, %c0_66] : memref<1x8x4xf32, #tpu.memory_space<vmem>>, vector<1x8x4xf32>
    %219 = vector.shape_cast %218 : vector<1x8x4xf32> to vector<8x4xf32>
    %220 = vector.shape_cast %214 : vector<8x4xf32> to vector<1x8x4xf32>
    tpu.vector_store %arg5[%c0_64, %c0_65, %c0_66], %220 {strides = array<i32>} : memref<1x8x4xf32, #tpu.memory_space<vmem>>, vector<1x8x4xf32>,
    %c0_67 = arith.constant 0 : index
    %c0_68 = arith.constant 0 : index
    %c0_69 = arith.constant 0 : index
    %221 = vector.load %arg6[%c0_67, %c0_68, %c0_69] : memref<1x8x4xi32, #tpu.memory_space<vmem>>, vector<1x8x4xi32>
    %222 = vector.shape_cast %221 : vector<1x8x4xi32> to vector<8x4xi32>
    %223 = vector.shape_cast %217 : vector<8x4xi32> to vector<1x8x4xi32>
    tpu.vector_store %arg6[%c0_67, %c0_68, %c0_69], %223 {strides = array<i32>} : memref<1x8x4xi32, #tpu.memory_space<vmem>>, vector<1x8x4xi32>,
    return
  }
  func.func @transform_0(%arg0: i32, %arg1: i32, %arg2: i32) -> (i32, i32, i32) {
    %c0_i32 = arith.constant 0 : i32
    %c0_i32_0 = arith.constant 0 : i32
    return %arg0, %arg1, %c0_i32 : i32, i32, i32
  }
  func.func @transform_1(%arg0: i32, %arg1: i32, %arg2: i32) -> (i32, i32, i32) {
    %c0_i32 = arith.constant 0 : i32
    %c0_i32_0 = arith.constant 0 : i32
    return %arg0, %arg2, %c0_i32 : i32, i32, i32
  }
  func.func @transform_2(%arg0: i32, %arg1: i32, %arg2: i32) -> (i32, i32, i32) {
    %c0_i32 = arith.constant 0 : i32
    %c0_i32_0 = arith.constant 0 : i32
    return %arg0, %arg1, %c0_i32 : i32, i32, i32
  }
  func.func @transform_3(%arg0: i32, %arg1: i32, %arg2: i32) -> (i32, i32, i32) {
    %c0_i32 = arith.constant 0 : i32
    %c0_i32_0 = arith.constant 0 : i32
    return %arg0, %arg1, %c0_i32 : i32, i32, i32
  }
}

</mosaic_0001>

<llo_original>
// kernel: tpu_custom_call.1
$region0: #{tpu_custom_call.1}
  #allocation0 [shape = 'u32[]', space=smem, size = 0x4, offset = 0x4, fixed_abs, tag = 'smem constant byte address 0x4 - core index']
  #allocation1 [shape = 'u32[72,128]{1,0:T(1,128)}', space=vmem, size = 0x9000, scoped, tag = 'internal scratch']
  %s0 = inlined_call_operand.vmem [shape: f32[2,8,8], index: 0, kind: input, shape index: {}]
  %s1 = inlined_call_operand.vmem [shape: f32[2,128,8], index: 1, kind: input, shape index: {}]
  %s2 = inlined_call_operand.vmem [shape: f32[2,8,4], index: 2, kind: output, shape index: {0}]
  %s3 = inlined_call_operand.vmem [shape: s32[2,8,4], index: 3, kind: output, shape index: {1}]
  %4 = xla_tuple %s2, %s3
  %s5 = sld [smem:[#allocation0]]
  $region53: #{tpu_custom_call.1} parent=0
    _
  %s7 = ssub.s32 1, %s5
  %s8 = scalar_select 0, %s7, %s5
  loop: start=0, step=1, limit=4
  $region2: #{tpu_custom_call.1} parent=0 // loop_pre_header
    _
  $region3: #{tpu_custom_call.1} parent=0 // loop_header
    %s10 = sphi 0, %s14
    %p11 = scmp.ge.s32.totalorder %s10, 4
    %s17 = sphi 0, %s36
    %s18 = sphi 0, %s32
    %s19 = sphi 0, %s28
    %s20 = sphi 0, %s17
    %s21 = sphi 0, %s18
    %s22 = sphi 0, %s19
    %s23 = sphi 0, %s20
    %s24 = sphi 0, %s21
    %s25 = sphi 0, %s22
    %s41 = sphi 0, %s43
    %s44 = sphi 0, %s41
    %s45 = sphi 0, %s44
    %s61 = sphi 0, %s45
    %s69 = sphi 0, %s71
    %s72 = sphi 0, %s69
    %s73 = sphi 0, %s72
    %s89 = sphi 0, %s73
    %s97 = sphi 0, %s99
    %s100 = sphi 0, %s97
    %s101 = sphi 0, %s100
    %s117 = sphi 0, %s101
    %s125 = sphi 0, %s127
    %s128 = sphi 0, %s125
    %s129 = sphi 0, %s128
    %s145 = sphi 0, %s129
  $region4: #{tpu_custom_call.1} parent=0 // loop_header_branch
    %13 = sbr.rel (%p11) target = $region8
  $region5: #{tpu_custom_call.1} parent=0 // loop_body
    %s15 = ssub.s32 %s10, 1
    %s16 = ssub.s32 %s10, 2
    %s26 = sadd.s32 1, %s19
    %p27 = scmp.ge.s32.totalorder %s26, 1
    %s28 = scalar_select %p27, 0, %s26
    %s29 = sadd.s32 1, %s18
    %s30 = scalar_select %p27, %s29, %s18
    %p31 = scmp.ge.s32.totalorder %s30, 1
    %s32 = scalar_select %p31, 0, %s30
    %s33 = sadd.s32 1, %s17
    %s34 = scalar_select %p31, %s33, %s17
    %p35 = scmp.ge.s32.totalorder %s34, 2
    %s36 = scalar_select %p35, 0, %s34
    %s37 = ssub.s32 %s17, %s36
    %s38 = ssub.s32 %s18, %s32
    %s39 = sor.u32 %s37, %s38
    %p40 = scmp.eq.s32.totalorder %s39, 0
    %s42 = sadd.s32 %s41, 1
    %s43 = scalar_select %p40, %s41, %s42
    %p46 = pneg %p40
    %p47 = scmp.eq.s32.totalorder %s10, 1
    %p48 = por %p46, %p47
    %p49 = scmp.ne.s32.totalorder %s41, %s44
    %p50 = scmp.eq.s32.totalorder %s10, 0
    %p51 = por %p49, %p50
    %p52 = scmp.ne.s32.totalorder %s41, %s44
    %p53 = scmp.eq.s32.totalorder %s15, 1
    %p54 = por %p52, %p53
    %p55 = scmp.ne.s32.totalorder %s44, %s45
    %p56 = scmp.eq.s32.totalorder %s15, 0
    %p57 = por %p55, %p56
    %p58 = scmp.ne.s32.totalorder %s44, %s45
    %p59 = scmp.eq.s32.totalorder %s16, 1
    %p60 = por %p58, %p59
    %p62 = scmp.ne.s32.totalorder %s45, %s61
    %p63 = scmp.eq.s32.totalorder %s16, 0
    %p64 = por %p62, %p63
    %s65 = ssub.s32 %s17, %s36
    %s66 = ssub.s32 %s19, %s28
    %s67 = sor.u32 %s65, %s66
    %p68 = scmp.eq.s32.totalorder %s67, 0
    %s70 = sadd.s32 %s69, 1
    %s71 = scalar_select %p68, %s69, %s70
    %p74 = pneg %p68
    %p75 = scmp.eq.s32.totalorder %s10, 1
    %p76 = por %p74, %p75
    %p77 = scmp.ne.s32.totalorder %s69, %s72
    %p78 = scmp.eq.s32.totalorder %s10, 0
    %p79 = por %p77, %p78
    %p80 = scmp.ne.s32.totalorder %s69, %s72
    %p81 = scmp.eq.s32.totalorder %s15, 1
    %p82 = por %p80, %p81
    %p83 = scmp.ne.s32.totalorder %s72, %s73
    %p84 = scmp.eq.s32.totalorder %s15, 0
    %p85 = por %p83, %p84
    %p86 = scmp.ne.s32.totalorder %s72, %s73
    %p87 = scmp.eq.s32.totalorder %s16, 1
    %p88 = por %p86, %p87
    %p90 = scmp.ne.s32.totalorder %s73, %s89
    %p91 = scmp.eq.s32.totalorder %s16, 0
    %p92 = por %p90, %p91
    %s93 = ssub.s32 %s17, %s36
    %s94 = ssub.s32 %s18, %s32
    %s95 = sor.u32 %s93, %s94
    %p96 = scmp.eq.s32.totalorder %s95, 0
    %s98 = sadd.s32 %s97, 1
    %s99 = scalar_select %p96, %s97, %s98
    %p102 = pneg %p96
    %p103 = scmp.eq.s32.totalorder %s10, 1
    %p104 = por %p102, %p103
    %p105 = scmp.ne.s32.totalorder %s97, %s100
    %p106 = scmp.eq.s32.totalorder %s10, 0
    %p107 = por %p105, %p106
    %p108 = scmp.ne.s32.totalorder %s97, %s100
    %p109 = scmp.eq.s32.totalorder %s15, 1
    %p110 = por %p108, %p109
    %p111 = scmp.ne.s32.totalorder %s100, %s101
    %p112 = scmp.eq.s32.totalorder %s15, 0
    %p113 = por %p111, %p112
    %p114 = scmp.ne.s32.totalorder %s100, %s101
    %p115 = scmp.eq.s32.totalorder %s16, 1
    %p116 = por %p114, %p115
    %p118 = scmp.ne.s32.totalorder %s101, %s117
    %p119 = scmp.eq.s32.totalorder %s16, 0
    %p120 = por %p118, %p119
    %s121 = ssub.s32 %s17, %s36
    %s122 = ssub.s32 %s18, %s32
    %s123 = sor.u32 %s121, %s122
    %p124 = scmp.eq.s32.totalorder %s123, 0
    %s126 = sadd.s32 %s125, 1
    %s127 = scalar_select %p124, %s125, %s126
    %p130 = pneg %p124
    %p131 = scmp.eq.s32.totalorder %s10, 1
    %p132 = por %p130, %p131
    %p133 = scmp.ne.s32.totalorder %s125, %s128
    %p134 = scmp.eq.s32.totalorder %s10, 0
    %p135 = por %p133, %p134
    %p136 = scmp.ne.s32.totalorder %s125, %s128
    %p137 = scmp.eq.s32.totalorder %s15, 1
    %p138 = por %p136, %p137
    %p139 = scmp.ne.s32.totalorder %s128, %s129
    %p140 = scmp.eq.s32.totalorder %s15, 0
    %p141 = por %p139, %p140
    %p142 = scmp.ne.s32.totalorder %s128, %s129
    %p143 = scmp.eq.s32.totalorder %s16, 1
    %p144 = por %p142, %p143
    %p146 = scmp.ne.s32.totalorder %s129, %s145
    %p147 = scmp.eq.s32.totalorder %s16, 0
    %p148 = por %p146, %p147
    %p149 = scmp.le.s32.totalorder 1, %s10
    %p150 = scmp.lt.s32.totalorder %s10, 3
    %p151 = pnand %p149, %p150
    %p152 = pneg %p151
    // Predicated region
    $region9: #{tpu_custom_call.1} parent=5 // pred_check
      _
    $region10: #{tpu_custom_call.1} parent=5 // pred_check_branch
      %154 = sbr.rel (%p151) target = $region12
    $region11: #{tpu_custom_call.1} parent=5 // pred_region
      %s155 = ssub.s32 %s10, 1
    $region12: #{tpu_custom_call.1} parent=5 // pred_fallthru
      _
    %p156 = scmp.lt.s32.totalorder %s10, 2
    // Predicated region
    $region13: #{tpu_custom_call.1} parent=5 // pred_check
      %p157 = pneg %p156
    $region14: #{tpu_custom_call.1} parent=5 // pred_check_branch
      %159 = sbr.rel (%p157) target = $region16
    $region15: #{tpu_custom_call.1} parent=5 // pred_region
      // Predicated region
      $region17: #{tpu_custom_call.1} parent=15 // pred_check
        %p160 = pneg %p51
      $region18: #{tpu_custom_call.1} parent=15 // pred_check_branch
        %162 = sbr.rel (%p160) target = $region20
      $region19: #{tpu_custom_call.1} parent=15 // pred_region
        %p163 = scmp.lt.s32.totalorder %s17, 1
        %s164 = scalar_select %p163, %s17, 1
        %p165 = scmp.lt.s32.totalorder %s18, 0
        %s166 = scalar_select %p165, %s18, 0
        %s167 = sadd.s32 %s166, %s164
        %s168 = smul.addr %s167, 8
        %s169 = scalar_lea.vmem %s0, %s168
      $region20: #{tpu_custom_call.1} parent=15 // pred_fallthru
        _
      // Predicated region
      $region21: #{tpu_custom_call.1} parent=15 // pred_check
        %p170 = pneg %p79
      $region22: #{tpu_custom_call.1} parent=15 // pred_check_branch
        %172 = sbr.rel (%p170) target = $region24
      $region23: #{tpu_custom_call.1} parent=15 // pred_region
        %s173 = smul.u32 16, %s19
        %p174 = scmp.lt.s32.totalorder %s17, 1
        %s175 = scalar_select %p174, %s17, 1
        %p176 = scmp.lt.s32.totalorder %s173, 15
        %s177 = scalar_select %p176, %s173, 15
        %s178 = smul.addr %s175, 16
        %s179 = sadd.s32 %s177, %s178
        %s180 = smul.addr %s179, 8
        %s181 = scalar_lea.vmem %s1, %s180
        %s182 = smul.u32 16, %s19
      $region24: #{tpu_custom_call.1} parent=15 // pred_fallthru
        _
    $region16: #{tpu_custom_call.1} parent=5 // pred_fallthru
      _
    %p183 = scmp.le.s32.totalorder 1, %s10
    %p184 = scmp.lt.s32.totalorder %s10, 3
    %p185 = pnand %p183, %p184
    %p186 = pneg %p185
    // Predicated region
    $region25: #{tpu_custom_call.1} parent=5 // pred_check
      _
    $region26: #{tpu_custom_call.1} parent=5 // pred_check_branch
      %188 = sbr.rel (%p185) target = $region28
    $region27: #{tpu_custom_call.1} parent=5 // pred_region
      %s189 = ssub.s32 %s10, 1
      %p190 = scmp.lt.s32.totalorder %s20, 1
      %s191 = scalar_select %p190, %s20, 1
      %p192 = scmp.lt.s32.totalorder %s21, 0
      %s193 = scalar_select %p192, %s21, 0
      %s194 = sadd.s32 %s193, %s191
      %s195 = smul.addr %s194, 8
      %s196 = scalar_lea.vmem %s0, %s195
      %p197 = pneg %p57
      %p198 = pneg %p54
      %s199 = smul.u32 16, %s22
      %p200 = scmp.lt.s32.totalorder %s20, 1
      %s201 = scalar_select %p200, %s20, 1
      %p202 = scmp.lt.s32.totalorder %s199, 15
      %s203 = scalar_select %p202, %s199, 15
      %s204 = smul.addr %s201, 16
      %s205 = sadd.s32 %s203, %s204
      %s206 = smul.addr %s205, 8
      %s207 = scalar_lea.vmem %s1, %s206
      %p208 = pneg %p85
      %p209 = pneg %p82
      %p210 = pneg %p113
      %p211 = pneg %p110
      %p212 = scmp.lt.s32.totalorder %s20, 1
      %s213 = scalar_select %p212, %s20, 1
      %p214 = scmp.lt.s32.totalorder %s21, 0
      %s215 = scalar_select %p214, %s21, 0
      %s216 = sadd.s32 %s215, %s213
      %s217 = smul.addr %s216, 8
      %s218 = scalar_lea.vmem %s2, %s217
      %p219 = pneg %p141
      %p220 = pneg %p138
      %p221 = scmp.lt.s32.totalorder %s20, 1
      %s222 = scalar_select %p221, %s20, 1
      %p223 = scmp.lt.s32.totalorder %s21, 0
      %s224 = scalar_select %p223, %s21, 0
      %s225 = sadd.s32 %s224, %s222
      %s226 = smul.addr %s225, 8
      %s227 = scalar_lea.vmem %s3, %s226
      %p228 = scmp.lt.s32.totalorder %s20, 1
      %s229 = scalar_select %p228, %s20, 1
      %p230 = scmp.lt.s32.totalorder %s21, 0
      %s231 = scalar_select %p230, %s21, 0
      %s232 = sadd.s32 %s231, %s229
      %s233 = smul.addr %s232, 8
      %s234 = scalar_lea.vmem %s0, %s233
      %s235 = smul.u32 16, %s22
      %p236 = scmp.lt.s32.totalorder %s20, 1
      %s237 = scalar_select %p236, %s20, 1
      %p238 = scmp.lt.s32.totalorder %s235, 15
      %s239 = scalar_select %p238, %s235, 15
      %s240 = smul.addr %s237, 16
      %s241 = sadd.s32 %s239, %s240
      %s242 = smul.addr %s241, 8
      %s243 = scalar_lea.vmem %s1, %s242
      %s244 = smul.u32 16, %s22
      %p245 = scmp.lt.s32.totalorder %s20, 1
      %s246 = scalar_select %p245, %s20, 1
      %p247 = scmp.lt.s32.totalorder %s21, 0
      %s248 = scalar_select %p247, %s21, 0
      %s249 = sadd.s32 %s248, %s246
      %s250 = smul.addr %s249, 8
      %s251 = scalar_lea.vmem %s2, %s250
      %p252 = scmp.lt.s32.totalorder %s20, 1
      %s253 = scalar_select %p252, %s20, 1
      %p254 = scmp.lt.s32.totalorder %s21, 0
      %s255 = scalar_select %p254, %s21, 0
      %s256 = sadd.s32 %s255, %s253
      %s257 = smul.addr %s256, 8
      %s258 = scalar_lea.vmem %s3, %s257
      %p259 = scmp.eq.s32.totalorder %s22, 0
      // Predicated region
      $region29: #{tpu_custom_call.1} parent=27 // pred_check
        %p260 = pneg %p259
      $region30: #{tpu_custom_call.1} parent=27 // pred_check_branch
        %262 = sbr.rel (%p260) target = $region32
      $region31: #{tpu_custom_call.1} parent=27 // pred_region
        %vm263 = vcmask 31744
        %264 = vst.msk [vmem:[%s251] sm:$0xff] %vm263, -inf
        %265 = vst.msk [vmem:[%s258] sm:$0xff] %vm263, 0
      $region32: #{tpu_custom_call.1} parent=27 // pred_fallthru
        _
      %v266 = vld [vmem:[%s234] sm:$0xff]
      %v267 = vld [vmem:[%s243] sm:$0xff]
      %v268 = vld [vmem:[%s243 + $0x8] sm:$0xff]
      %v269 = vld [vmem:[%s243 + $0x10] sm:$0xff]
      %v270 = vld [vmem:[%s243 + $0x18] sm:$0xff]
      %v271 = vld [vmem:[%s243 + $0x20] sm:$0xff]
      %v272 = vld [vmem:[%s243 + $0x28] sm:$0xff]
      %v273 = vld [vmem:[%s243 + $0x30] sm:$0xff]
      %v274 = vld [vmem:[%s243 + $0x38] sm:$0xff]
      %v275 = vld [vmem:[%s243 + $0x40] sm:$0xff]
      %v276 = vld [vmem:[%s243 + $0x48] sm:$0xff]
      %v277 = vld [vmem:[%s243 + $0x50] sm:$0xff]
      %v278 = vld [vmem:[%s243 + $0x58] sm:$0xff]
      %v279 = vld [vmem:[%s243 + $0x60] sm:$0xff]
      %v280 = vld [vmem:[%s243 + $0x68] sm:$0xff]
      %v281 = vld [vmem:[%s243 + $0x70] sm:$0xff]
      %v282 = vld [vmem:[%s243 + $0x78] sm:$0xff]
      %vm283 = vcmask 64512
      %v285 = vsel %vm283, %v266, 0
      %v288 = vsel %vm283, %v267, 0
      %v291 = vsel %vm283, %v268, 0
      %v294 = vsel %vm283, %v269, 0
      %v297 = vsel %vm283, %v270, 0
      %v300 = vsel %vm283, %v271, 0
      %v303 = vsel %vm283, %v272, 0
      %v306 = vsel %vm283, %v273, 0
      %v309 = vsel %vm283, %v274, 0
      %v312 = vsel %vm283, %v275, 0
      %v315 = vsel %vm283, %v276, 0
      %v318 = vsel %vm283, %v277, 0
      %v321 = vsel %vm283, %v278, 0
      %v324 = vsel %vm283, %v279, 0
      %v327 = vsel %vm283, %v280, 0
      %v330 = vsel %vm283, %v281, 0
      %v333 = vsel %vm283, %v282, 0
      %335 = vmatpush.xpose.msra.mxu0 %v333
      %336 = vmatpush.xpose.msra.mxu0 %v330
      %337 = vmatpush.xpose.msra.mxu0 %v327
      %338 = vmatpush.xpose.msra.mxu0 %v324
      %339 = vmatpush.xpose.msra.mxu0 %v321
      %340 = vmatpush.xpose.msra.mxu0 %v318
      %341 = vmatpush.xpose.msra.mxu0 %v315
      %342 = vmatpush.xpose.msra.mxu0 %v312
      %343 = vmatpush.xpose.msra.mxu0 %v309
      %344 = vmatpush.xpose.msra.mxu0 %v306
      %345 = vmatpush.xpose.msra.mxu0 %v303
      %346 = vmatpush.xpose.msra.mxu0 %v300
      %347 = vmatpush.xpose.msra.mxu0 %v297
      %348 = vmatpush.xpose.msra.mxu0 %v294
      %349 = vmatpush.xpose.msra.mxu0 %v291
      %350 = vmatpush.xpose.msra.mxu0 %v288
      %351 = vmatmul.f32.gmra.mxu0 %v285
      %v352 = vpop.f32.mrf.mxu0
      %v353 = vadd.f32 0.0, %v352
      %354 = vdwg.mxu0
      %v355 = vlaneseq
      %v356 = vand.u32 %v355, 127
      %s357 = smul.u32 %s22, 128
      %v358 = vstv %s357
      %v359 = vadd.s32 %v358, %v356
      %vm360 = vcmp.lt.s32.totalorder %v359, 8
      %v361 = vsel %vm360, %v353, -inf
      %v362 = vld [vmem:[%s251] sm:$0xff]
      %v363 = vld [vmem:[%s258] sm:$0xff]
      %364 = vmax.xlane.f32.xlu0 %v361
      %v365 = vpop.xlane.xlu0 %364
      %vm366 = vcmask 31744
      %v367 = vsel %vm366, %v362, -inf
      %368 = vmax.xlane.f32.xlu0 %v367
      %v369 = vpop.xlane.xlu0 %368
      %vm370 = vcmp.ge.f32.partialorder %v365, %v369
      %vm371 = vcmp.eq.f32.partialorder %v361, %v365
      %v372 = vsel %vm371, %v356, 128
      %v373 = vand.u32 %v372, 65535
      %v374 = vshra.s32 %v372, 16
      %v375 = vcvt.s32.f32 %v373
      %v376 = vcvt.s32.f32 %v374
      %377 = vmin.xlane.f32.xlu0 %v376
      %v378 = vpop.xlane.xlu0 %377
      %vm379 = vcmp.eq.f32.partialorder %v376, %v378
      %v380 = vsel %vm379, %v375, inf
      %381 = vmin.xlane.f32.xlu0 %v380
      %v382 = vpop.xlane.xlu0 %381
      %v383 = vcvt.f32.s32 %v382
      %v384 = vcvt.f32.s32 %v378
      %v385 = vshll.u32 %v384, 16
      %v386 = vadd.s32 %v385, %v383
      %vm387 = vcmp.eq.f32.partialorder %v362, %v369
      %v388 = vsel %vm387, %v356, 4
      %v389 = vsel %vm366, %v388, 2147483647
      %v390 = vand.u32 %v389, 65535
      %v391 = vshra.s32 %v389, 16
      %v392 = vcvt.s32.f32 %v390
      %v393 = vcvt.s32.f32 %v391
      %394 = vmin.xlane.f32.xlu0 %v393
      %v395 = vpop.xlane.xlu0 %394
      %vm396 = vcmp.eq.f32.partialorder %v393, %v395
      %v397 = vsel %vm396, %v392, inf
      %398 = vmin.xlane.f32.xlu0 %v397
      %v399 = vpop.xlane.xlu0 %398
      %v400 = vcvt.f32.s32 %v399
      %v401 = vcvt.f32.s32 %v395
      %v402 = vshll.u32 %v401, 16
      %v403 = vadd.s32 %v402, %v400
      %vm404 = vcmp.eq.s32.totalorder %v356, %v386
      %v405 = vsel %vm404, %v359, 0
      %v406 = vand.u32 %v405, 65535
      %v407 = vshrl.u32 %v405, 16
      %v408 = vcvt.s32.f32 %v406
      %v409 = vcvt.s32.f32 %v407
      %410 = vadd.xlane.f32.xlu0 %v408
      %v411 = vpop.xlane.xlu0 %410
      %412 = vadd.xlane.f32.xlu0 %v409
      %v413 = vpop.xlane.xlu0 %412
      %v414 = vcvt.f32.s32 %v411
      %v415 = vcvt.f32.s32 %v413
      %v416 = vshll.u32 %v415, 16
      %v417 = vadd.s32 %v416, %v414
      %vm418 = vcmp.eq.s32.totalorder %v356, %v403
      %v419 = vsel %vm418, %v363, 0
      %v420 = vsel %vm366, %v419, 0
      %v421 = vand.u32 %v420, 65535
      %v422 = vshrl.u32 %v420, 16
      %v423 = vcvt.s32.f32 %v421
      %v424 = vcvt.s32.f32 %v422
      %425 = vadd.xlane.f32.xlu0 %v423
      %v426 = vpop.xlane.xlu0 %425
      %427 = vadd.xlane.f32.xlu0 %v424
      %v428 = vpop.xlane.xlu0 %427
      %v429 = vcvt.f32.s32 %v426
      %v430 = vcvt.f32.s32 %v428
      %v431 = vshll.u32 %v430, 16
      %v432 = vadd.s32 %v431, %v429
      %v433 = vmax.f32 %v365, %v369
      %v434 = vsel %vm370, %v417, %v432
      %v435 = vsel %vm370, 1, 0
      %vm436 = vcmp.eq.s32.totalorder %v435, 1
      %vm437 = vmand %vm436, %vm404
      %v438 = vsel %vm437, -inf, %v361
      %vm439 = vmxor %vm370, 1
      %v440 = vsel %vm439, 1, 0
      %vm441 = vcmp.eq.s32.totalorder %v440, 1
      %vm442 = vmand %vm441, %vm418
      %v443 = vsel %vm442, -inf, %v362
      %444 = vmax.xlane.f32.xlu0 %v438
      %v445 = vpop.xlane.xlu0 %444
      %v446 = vsel %vm366, %v443, -inf
      %447 = vmax.xlane.f32.xlu0 %v446
      %v448 = vpop.xlane.xlu0 %447
      %vm449 = vcmp.ge.f32.partialorder %v445, %v448
      %vm450 = vcmp.eq.f32.partialorder %v438, %v445
      %v451 = vsel %vm450, %v356, 128
      %v452 = vand.u32 %v451, 65535
      %v453 = vshra.s32 %v451, 16
      %v454 = vcvt.s32.f32 %v452
      %v455 = vcvt.s32.f32 %v453
      %456 = vmin.xlane.f32.xlu0 %v455
      %v457 = vpop.xlane.xlu0 %456
      %vm458 = vcmp.eq.f32.partialorder %v455, %v457
      %v459 = vsel %vm458, %v454, inf
      %460 = vmin.xlane.f32.xlu0 %v459
      %v461 = vpop.xlane.xlu0 %460
      %v462 = vcvt.f32.s32 %v461
      %v463 = vcvt.f32.s32 %v457
      %v464 = vshll.u32 %v463, 16
      %v465 = vadd.s32 %v464, %v462
      %vm466 = vcmp.eq.f32.partialorder %v443, %v448
      %v467 = vsel %vm466, %v356, 4
      %v468 = vsel %vm366, %v467, 2147483647
      %v469 = vand.u32 %v468, 65535
      %v470 = vshra.s32 %v468, 16
      %v471 = vcvt.s32.f32 %v469
      %v472 = vcvt.s32.f32 %v470
      %473 = vmin.xlane.f32.xlu0 %v472
      %v474 = vpop.xlane.xlu0 %473
      %vm475 = vcmp.eq.f32.partialorder %v472, %v474
      %v476 = vsel %vm475, %v471, inf
      %477 = vmin.xlane.f32.xlu0 %v476
      %v478 = vpop.xlane.xlu0 %477
      %v479 = vcvt.f32.s32 %v478
      %v480 = vcvt.f32.s32 %v474
      %v481 = vshll.u32 %v480, 16
      %v482 = vadd.s32 %v481, %v479
      %vm483 = vcmp.eq.s32.totalorder %v356, %v465
      %v484 = vsel %vm483, %v359, 0
      %v485 = vand.u32 %v484, 65535
      %v486 = vshrl.u32 %v484, 16
      %v487 = vcvt.s32.f32 %v485
      %v488 = vcvt.s32.f32 %v486
      %489 = vadd.xlane.f32.xlu0 %v487
      %v490 = vpop.xlane.xlu0 %489
      %491 = vadd.xlane.f32.xlu0 %v488
      %v492 = vpop.xlane.xlu0 %491
      %v493 = vcvt.f32.s32 %v490
      %v494 = vcvt.f32.s32 %v492
      %v495 = vshll.u32 %v494, 16
      %v496 = vadd.s32 %v495, %v493
      %vm497 = vcmp.eq.s32.totalorder %v356, %v482
      %v498 = vsel %vm497, %v363, 0
      %v499 = vsel %vm366, %v498, 0
      %v500 = vand.u32 %v499, 65535
      %v501 = vshrl.u32 %v499, 16
      %v502 = vcvt.s32.f32 %v500
      %v503 = vcvt.s32.f32 %v501
      %504 = vadd.xlane.f32.xlu0 %v502
      %v505 = vpop.xlane.xlu0 %504
      %506 = vadd.xlane.f32.xlu0 %v503
      %v507 = vpop.xlane.xlu0 %506
      %v508 = vcvt.f32.s32 %v505
      %v509 = vcvt.f32.s32 %v507
      %v510 = vshll.u32 %v509, 16
      %v511 = vadd.s32 %v510, %v508
      %v512 = vmax.f32 %v445, %v448
      %v513 = vsel %vm449, %v496, %v511
      %v514 = vsel %vm449, 1, 0
      %vm515 = vcmp.eq.s32.totalorder %v514, 1
      %vm516 = vmand %vm515, %vm483
      %v517 = vsel %vm516, -inf, %v438
      %vm518 = vmxor %vm449, 1
      %v519 = vsel %vm518, 1, 0
      %vm520 = vcmp.eq.s32.totalorder %v519, 1
      %vm521 = vmand %vm520, %vm497
      %v522 = vsel %vm521, -inf, %v443
      %523 = vmax.xlane.f32.xlu0 %v517
      %v524 = vpop.xlane.xlu0 %523
      %v525 = vsel %vm366, %v522, -inf
      %526 = vmax.xlane.f32.xlu0 %v525
      %v527 = vpop.xlane.xlu0 %526
      %vm528 = vcmp.ge.f32.partialorder %v524, %v527
      %vm529 = vcmp.eq.f32.partialorder %v517, %v524
      %v530 = vsel %vm529, %v356, 128
      %v531 = vand.u32 %v530, 65535
      %v532 = vshra.s32 %v530, 16
      %v533 = vcvt.s32.f32 %v531
      %v534 = vcvt.s32.f32 %v532
      %535 = vmin.xlane.f32.xlu0 %v534
      %v536 = vpop.xlane.xlu0 %535
      %vm537 = vcmp.eq.f32.partialorder %v534, %v536
      %v538 = vsel %vm537, %v533, inf
      %539 = vmin.xlane.f32.xlu0 %v538
      %v540 = vpop.xlane.xlu0 %539
      %v541 = vcvt.f32.s32 %v540
      %v542 = vcvt.f32.s32 %v536
      %v543 = vshll.u32 %v542, 16
      %v544 = vadd.s32 %v543, %v541
      %vm545 = vcmp.eq.f32.partialorder %v522, %v527
      %v546 = vsel %vm545, %v356, 4
      %v547 = vsel %vm366, %v546, 2147483647
      %v548 = vand.u32 %v547, 65535
      %v549 = vshra.s32 %v547, 16
      %v550 = vcvt.s32.f32 %v548
      %v551 = vcvt.s32.f32 %v549
      %552 = vmin.xlane.f32.xlu0 %v551
      %v553 = vpop.xlane.xlu0 %552
      %vm554 = vcmp.eq.f32.partialorder %v551, %v553
      %v555 = vsel %vm554, %v550, inf
      %556 = vmin.xlane.f32.xlu0 %v555
      %v557 = vpop.xlane.xlu0 %556
      %v558 = vcvt.f32.s32 %v557
      %v559 = vcvt.f32.s32 %v553
      %v560 = vshll.u32 %v559, 16
      %v561 = vadd.s32 %v560, %v558
      %vm562 = vcmp.eq.s32.totalorder %v356, %v544
      %v563 = vsel %vm562, %v359, 0
      %v564 = vand.u32 %v563, 65535
      %v565 = vshrl.u32 %v563, 16
      %v566 = vcvt.s32.f32 %v564
      %v567 = vcvt.s32.f32 %v565
      %568 = vadd.xlane.f32.xlu0 %v566
      %v569 = vpop.xlane.xlu0 %568
      %570 = vadd.xlane.f32.xlu0 %v567
      %v571 = vpop.xlane.xlu0 %570
      %v572 = vcvt.f32.s32 %v569
      %v573 = vcvt.f32.s32 %v571
      %v574 = vshll.u32 %v573, 16
      %v575 = vadd.s32 %v574, %v572
      %vm576 = vcmp.eq.s32.totalorder %v356, %v561
      %v577 = vsel %vm576, %v363, 0
      %v578 = vsel %vm366, %v577, 0
      %v579 = vand.u32 %v578, 65535
      %v580 = vshrl.u32 %v578, 16
      %v581 = vcvt.s32.f32 %v579
      %v582 = vcvt.s32.f32 %v580
      %583 = vadd.xlane.f32.xlu0 %v581
      %v584 = vpop.xlane.xlu0 %583
      %585 = vadd.xlane.f32.xlu0 %v582
      %v586 = vpop.xlane.xlu0 %585
      %v587 = vcvt.f32.s32 %v584
      %v588 = vcvt.f32.s32 %v586
      %v589 = vshll.u32 %v588, 16
      %v590 = vadd.s32 %v589, %v587
      %v591 = vmax.f32 %v524, %v527
      %v592 = vsel %vm528, %v575, %v590
      %v593 = vsel %vm528, 1, 0
      %vm594 = vcmp.eq.s32.totalorder %v593, 1
      %vm595 = vmand %vm594, %vm562
      %v596 = vsel %vm595, -inf, %v517
      %vm597 = vmxor %vm528, 1
      %v598 = vsel %vm597, 1, 0
      %vm599 = vcmp.eq.s32.totalorder %v598, 1
      %vm600 = vmand %vm599, %vm576
      %v601 = vsel %vm600, -inf, %v522
      %602 = vmax.xlane.f32.xlu0 %v596
      %v603 = vpop.xlane.xlu0 %602
      %v604 = vsel %vm366, %v601, -inf
      %605 = vmax.xlane.f32.xlu0 %v604
      %v606 = vpop.xlane.xlu0 %605
      %vm607 = vcmp.ge.f32.partialorder %v603, %v606
      %vm608 = vcmp.eq.f32.partialorder %v596, %v603
      %v609 = vsel %vm608, %v356, 128
      %v610 = vand.u32 %v609, 65535
      %v611 = vshra.s32 %v609, 16
      %v612 = vcvt.s32.f32 %v610
      %v613 = vcvt.s32.f32 %v611
      %614 = vmin.xlane.f32.xlu0 %v613
      %v615 = vpop.xlane.xlu0 %614
      %vm616 = vcmp.eq.f32.partialorder %v613, %v615
      %v617 = vsel %vm616, %v612, inf
      %618 = vmin.xlane.f32.xlu0 %v617
      %v619 = vpop.xlane.xlu0 %618
      %v620 = vcvt.f32.s32 %v619
      %v621 = vcvt.f32.s32 %v615
      %v622 = vshll.u32 %v621, 16
      %v623 = vadd.s32 %v622, %v620
      %vm624 = vcmp.eq.f32.partialorder %v601, %v606
      %v625 = vsel %vm624, %v356, 4
      %v626 = vsel %vm366, %v625, 2147483647
      %v627 = vand.u32 %v626, 65535
      %v628 = vshra.s32 %v626, 16
      %v629 = vcvt.s32.f32 %v627
      %v630 = vcvt.s32.f32 %v628
      %631 = vmin.xlane.f32.xlu0 %v630
      %v632 = vpop.xlane.xlu0 %631
      %vm633 = vcmp.eq.f32.partialorder %v630, %v632
      %v634 = vsel %vm633, %v629, inf
      %635 = vmin.xlane.f32.xlu0 %v634
      %v636 = vpop.xlane.xlu0 %635
      %v637 = vcvt.f32.s32 %v636
      %v638 = vcvt.f32.s32 %v632
      %v639 = vshll.u32 %v638, 16
      %v640 = vadd.s32 %v639, %v637
      %vm641 = vcmp.eq.s32.totalorder %v356, %v623
      %v642 = vsel %vm641, %v359, 0
      %v643 = vand.u32 %v642, 65535
      %v644 = vshrl.u32 %v642, 16
      %v645 = vcvt.s32.f32 %v643
      %v646 = vcvt.s32.f32 %v644
      %647 = vadd.xlane.f32.xlu0 %v645
      %v648 = vpop.xlane.xlu0 %647
      %649 = vadd.xlane.f32.xlu0 %v646
      %v650 = vpop.xlane.xlu0 %649
      %v651 = vcvt.f32.s32 %v648
      %v652 = vcvt.f32.s32 %v650
      %v653 = vshll.u32 %v652, 16
      %v654 = vadd.s32 %v653, %v651
      %vm655 = vcmp.eq.s32.totalorder %v356, %v640
      %v656 = vsel %vm655, %v363, 0
      %v657 = vsel %vm366, %v656, 0
      %v658 = vand.u32 %v657, 65535
      %v659 = vshrl.u32 %v657, 16
      %v660 = vcvt.s32.f32 %v658
      %v661 = vcvt.s32.f32 %v659
      %662 = vadd.xlane.f32.xlu0 %v660
      %v663 = vpop.xlane.xlu0 %662
      %664 = vadd.xlane.f32.xlu0 %v661
      %v665 = vpop.xlane.xlu0 %664
      %v666 = vcvt.f32.s32 %v663
      %v667 = vcvt.f32.s32 %v665
      %v668 = vshll.u32 %v667, 16
      %v669 = vadd.s32 %v668, %v666
      %v670 = vmax.f32 %v603, %v606
      %v671 = vsel %vm607, %v654, %v669
      %vm672 = vcmp.eq.s32.totalorder %v356, 0
      %v673 = vsel %vm672, %v433, 0.0
      %v674 = vsel %vm672, %v434, 0
      %vm675 = vcmp.eq.s32.totalorder %v356, 1
      %v676 = vsel %vm675, %v512, %v673
      %v677 = vsel %vm675, %v513, %v674
      %vm678 = vcmp.eq.s32.totalorder %v356, 2
      %v679 = vsel %vm678, %v591, %v676
      %v680 = vsel %vm678, %v592, %v677
      %vm681 = vcmp.eq.s32.totalorder %v356, 3
      %v682 = vsel %vm681, %v670, %v679
      %v683 = vsel %vm681, %v671, %v680
      %684 = vst.msk [vmem:[%s251] sm:$0xff] %vm366, %v682
      %685 = vst.msk [vmem:[%s258] sm:$0xff] %vm366, %v683
      %p686 = scmp.lt.s32.totalorder %s20, 1
      %s687 = scalar_select %p686, %s20, 1
      %p688 = scmp.lt.s32.totalorder %s21, 0
      %s689 = scalar_select %p688, %s21, 0
      %s690 = sadd.s32 %s689, %s687
      %s691 = smul.addr %s690, 8
      %s692 = scalar_lea.vmem %s2, %s691
      %p693 = scmp.lt.s32.totalorder %s20, 1
      %s694 = scalar_select %p693, %s20, 1
      %p695 = scmp.lt.s32.totalorder %s21, 0
      %s696 = scalar_select %p695, %s21, 0
      %s697 = sadd.s32 %s696, %s694
      %s698 = smul.addr %s697, 8
      %s699 = scalar_lea.vmem %s3, %s698
      // Predicated region
      $region33: #{tpu_custom_call.1} parent=27 // pred_check
        %p700 = pneg %p110
      $region34: #{tpu_custom_call.1} parent=27 // pred_check_branch
        %702 = sbr.rel (%p700) target = $region36
      $region35: #{tpu_custom_call.1} parent=27 // pred_region
        _
      $region36: #{tpu_custom_call.1} parent=27 // pred_fallthru
        _
      // Predicated region
      $region37: #{tpu_custom_call.1} parent=27 // pred_check
        %p703 = pneg %p138
      $region38: #{tpu_custom_call.1} parent=27 // pred_check_branch
        %705 = sbr.rel (%p703) target = $region40
      $region39: #{tpu_custom_call.1} parent=27 // pred_region
        _
      $region40: #{tpu_custom_call.1} parent=27 // pred_fallthru
        _
    $region28: #{tpu_custom_call.1} parent=5 // pred_fallthru
      _
    %p706 = scmp.le.s32.totalorder 2, %s10
    // Predicated region
    $region41: #{tpu_custom_call.1} parent=5 // pred_check
      %p707 = pneg %p706
    $region42: #{tpu_custom_call.1} parent=5 // pred_check_branch
      %709 = sbr.rel (%p707) target = $region44
    $region43: #{tpu_custom_call.1} parent=5 // pred_region
      %s710 = ssub.s32 %s10, 2
      // Predicated region
      $region45: #{tpu_custom_call.1} parent=43 // pred_check
        %p711 = pneg %p116
      $region46: #{tpu_custom_call.1} parent=43 // pred_check_branch
        %713 = sbr.rel (%p711) target = $region48
      $region47: #{tpu_custom_call.1} parent=43 // pred_region
        %p714 = scmp.lt.s32.totalorder %s23, 1
        %s715 = scalar_select %p714, %s23, 1
        %p716 = scmp.lt.s32.totalorder %s24, 0
        %s717 = scalar_select %p716, %s24, 0
        %s718 = sadd.s32 %s717, %s715
        %s719 = smul.addr %s718, 8
        %s720 = scalar_lea.vmem %s2, %s719
      $region48: #{tpu_custom_call.1} parent=43 // pred_fallthru
        _
      // Predicated region
      $region49: #{tpu_custom_call.1} parent=43 // pred_check
        %p721 = pneg %p144
      $region50: #{tpu_custom_call.1} parent=43 // pred_check_branch
        %723 = sbr.rel (%p721) target = $region52
      $region51: #{tpu_custom_call.1} parent=43 // pred_region
        %p724 = scmp.lt.s32.totalorder %s23, 1
        %s725 = scalar_select %p724, %s23, 1
        %p726 = scmp.lt.s32.totalorder %s24, 0
        %s727 = scalar_select %p726, %s24, 0
        %s728 = sadd.s32 %s727, %s725
        %s729 = smul.addr %s728, 8
        %s730 = scalar_lea.vmem %s3, %s729
      $region52: #{tpu_custom_call.1} parent=43 // pred_fallthru
        _
    $region44: #{tpu_custom_call.1} parent=5 // pred_fallthru
      _
  $region6: #{tpu_custom_call.1} parent=0 // loop_footer
    %s14 = sadd.s32 1, %s10
  $region7: #{tpu_custom_call.1} parent=0 // loop_footer_branch
    %9 = sbr.rel target = $region3
  $region8: #{tpu_custom_call.1} parent=0 // loop_exit
    _

</llo_original>
